<compile_context>
chip_gen: v5e
topology: v5e:2x2
jax: 0.10.0
libtpu: 0.0.40
codegen_flags: <defaults>
</compile_context>

<pallas_src>
import math

import jax
import jax.numpy as jnp
from jax.experimental import pallas as pl
from jax.experimental.pallas import tpu as pltpu


def build_pe_table(d_model: int, max_len: int = 5000) -> jnp.ndarray:
    """Reproduces the PyTorch buffer init: pe[pos, 2i] = sin, pe[pos, 2i+1] = cos."""
    assert d_model % 2 == 0, "d_model must be even (same limitation as the PyTorch code)"
    position = jnp.arange(0, max_len, dtype=jnp.float32)[:, None]          # (max_len, 1)
    div_term = jnp.exp(
        jnp.arange(0, d_model, 2, dtype=jnp.float32) * (-math.log(10000.0) / d_model)
    )                                                                       # (d_model/2,)
    angles = position * div_term                                            # (max_len, d_model/2)
    pe = jnp.zeros((max_len, d_model), dtype=jnp.float32)
    pe = pe.at[:, 0::2].set(jnp.sin(angles))
    pe = pe.at[:, 1::2].set(jnp.cos(angles))
    # PyTorch stores (max_len, 1, d_model); we keep (max_len, d_model) and
    # broadcast the batch axis at call time.
    return pe


def _pe_add_kernel_3d(x_ref, pe_ref, o_ref):
    # x_ref: (TILE_S, B, D), pe_ref: (TILE_S, D) -> broadcast add over batch.
    pe = pe_ref[...]                       # load tile, then broadcast as an array
    o_ref[...] = x_ref[...] + pe[:, None, :]


def _pe_add_kernel_2d(x_ref, pe_ref, o_ref):
    # x_ref / pe_ref / o_ref: (TILE_S, B*D) — pe already broadcast in wrapper.
    o_ref[...] = x_ref[...] + pe_ref[...]


def _pick_tile_s(S: int, row_bytes: int, target_bytes: int = 4 * 1024 * 1024) -> int:
    """Largest multiple-of-8 row count whose x tile is ~target_bytes (or all of S)."""
    rows = max(1, target_bytes // max(1, row_bytes))
    if rows >= S:
        return S
    return max(8, (rows // 8) * 8)


def positional_encoding_forward(x: jnp.ndarray, pe_table: jnp.ndarray) -> jnp.ndarray:
    """x: (seq_len, batch, d_model). Returns x + pe[:seq_len] broadcast over batch."""
    S, B, D = x.shape
    itemsize = jnp.dtype(x.dtype).itemsize
    # Cast once in the wrapper (no per-tile VPU cast inside the kernel).
    pe_slice = pe_table[:S, :].astype(x.dtype)        # (S, D), tiny

    tile_s = _pick_tile_s(S, B * D * itemsize)
    grid = (pl.cdiv(S, tile_s),)
    cparams = pltpu.CompilerParams(dimension_semantics=("parallel",))

    if D % 128 == 0:
        # Lane-dense already: keep the (S, B, D) layout, broadcast pe in-kernel.
        return pl.pallas_call(
            _pe_add_kernel_3d,
            out_shape=jax.ShapeDtypeStruct((S, B, D), x.dtype),
            grid_spec=pltpu.PrefetchScalarGridSpec(
                num_scalar_prefetch=0,
                grid=grid,
                in_specs=[
                    pl.BlockSpec((tile_s, B, D), lambda i: (i, 0, 0)),
                    pl.BlockSpec((tile_s, D), lambda i: (i, 0)),
                ],
                out_specs=pl.BlockSpec((tile_s, B, D), lambda i: (i, 0, 0)),
            ),
            compiler_params=cparams,
        )(x, pe_slice)

    # Small / non-128-multiple D: present a lane-dense (S, B*D) view so the
    # store path is not mostly-masked vst.msk. pe is tiny, so the one-time
    # broadcast to (S, B*D) in JAX is cheap for this regime.
    F = B * D
    x2 = x.reshape(S, F)
    pe2 = jnp.tile(pe_slice, (1, B))                  # pe2[s, b*D + d] == pe[s, d]
    out2 = pl.pallas_call(
        _pe_add_kernel_2d,
        out_shape=jax.ShapeDtypeStruct((S, F), x.dtype),
        grid_spec=pltpu.PrefetchScalarGridSpec(
            num_scalar_prefetch=0,
            grid=grid,
            in_specs=[
                pl.BlockSpec((tile_s, F), lambda i: (i, 0)),
                pl.BlockSpec((tile_s, F), lambda i: (i, 0)),
            ],
            out_specs=pl.BlockSpec((tile_s, F), lambda i: (i, 0)),
        ),
        compiler_params=cparams,
    )(x2, pe2)
    return out2.reshape(S, B, D)


if __name__ == "__main__":
    key = jax.random.PRNGKey(0)

    # Case 1: the module's small test shape (D < 128 -> flattened lane-dense path).
    seq_len, batch, d_model = 8, 2, 32
    x = jax.random.normal(key, (seq_len, batch, d_model), dtype=jnp.float32)
    pe_table = build_pe_table(d_model, max_len=5000)
    out = jax.block_until_ready(positional_encoding_forward(x, pe_table))
    ref = x + pe_table[:seq_len, None, :]
    assert out.shape == x.shape and out.dtype == x.dtype
    assert jnp.allclose(out, ref, atol=1e-6, rtol=1e-6)

    # Case 2: exercise the D % 128 == 0 (3-D, no-reshape) path at a small shape.
    seq_len2, batch2, d_model2 = 16, 2, 128
    x2 = jax.random.normal(jax.random.PRNGKey(1), (seq_len2, batch2, d_model2),
                           dtype=jnp.float32)
    pe_table2 = build_pe_table(d_model2, max_len=5000)
    out2 = jax.block_until_ready(positional_encoding_forward(x2, pe_table2))
    ref2 = x2 + pe_table2[:seq_len2, None, :]
    assert out2.shape == x2.shape and out2.dtype == x2.dtype
    assert jnp.allclose(out2, ref2, atol=1e-6, rtol=1e-6)

    print("KERNEL_OK")
</pallas_src>

<mosaic_0001>
module attributes {stable_mosaic.version = 11 : i64} {
  func.func @_pe_add_kernel_2d(%arg0: i32, %arg1: memref<8x64xf32, #tpu.memory_space<vmem>>, %arg2: memref<8x64xf32, #tpu.memory_space<vmem>>, %arg3: memref<8x64xf32, #tpu.memory_space<vmem>>) attributes {dimension_semantics = [#tpu.dimension_semantics<parallel>], iteration_bounds = array<i64: 1>, scalar_prefetch = 0 : i64, scratch_operands = 0 : i64, tpu.core_type = #tpu.core_type<tc>, window_params = [{transform_indices = @transform_0, window_bounds = array<i64: 8, 64>}, {transform_indices = @transform_1, window_bounds = array<i64: 8, 64>}, {transform_indices = @transform_2, window_bounds = array<i64: 8, 64>}]} {
    %c0 = arith.constant 0 : index
    %c0_0 = arith.constant 0 : index
    %0 = vector.load %arg1[%c0, %c0_0] : memref<8x64xf32, #tpu.memory_space<vmem>>, vector<8x64xf32>
    %c0_1 = arith.constant 0 : index
    %c0_2 = arith.constant 0 : index
    %1 = vector.load %arg2[%c0_1, %c0_2] : memref<8x64xf32, #tpu.memory_space<vmem>>, vector<8x64xf32>
    %2 = arith.addf %0, %1 : vector<8x64xf32>
    %c0_3 = arith.constant 0 : index
    %c0_4 = arith.constant 0 : index
    %3 = vector.load %arg3[%c0_3, %c0_4] : memref<8x64xf32, #tpu.memory_space<vmem>>, vector<8x64xf32>
    tpu.vector_store %arg3[%c0_3, %c0_4], %2 {strides = array<i32>} : memref<8x64xf32, #tpu.memory_space<vmem>>, vector<8x64xf32>,
    return
  }
  func.func @transform_0(%arg0: i32) -> (i32, i32) {
    %c0_i32 = arith.constant 0 : i32
    %c0_i32_0 = arith.constant 0 : i32
    return %arg0, %c0_i32 : i32, i32
  }
  func.func @transform_1(%arg0: i32) -> (i32, i32) {
    %c0_i32 = arith.constant 0 : i32
    %c0_i32_0 = arith.constant 0 : i32
    return %arg0, %c0_i32 : i32, i32
  }
  func.func @transform_2(%arg0: i32) -> (i32, i32) {
    %c0_i32 = arith.constant 0 : i32
    %c0_i32_0 = arith.constant 0 : i32
    return %arg0, %c0_i32 : i32, i32
  }
}

</mosaic_0001>

<llo_original>
// kernel: tpu_custom_call.1
$region0: #{tpu_custom_call.1}
  #allocation0 [shape = 'u32[]', space=smem, size = 0x4, offset = 0x4, fixed_abs, tag = 'smem constant byte address 0x4 - core index']
  #allocation1 [shape = 'u32[72,128]{1,0:T(1,128)}', space=vmem, size = 0x9000, scoped, tag = 'internal scratch']
  %s0 = inlined_call_operand.hbm [shape: f32[8,64], index: 0, kind: input, shape index: {}]
  %s1 = inlined_call_operand.hbm [shape: f32[8,64], index: 1, kind: input, shape index: {}]
  %s2 = inlined_call_operand.hbm [shape: f32[8,64], index: 2, kind: output, shape index: {}]
  %s3 = sld [smem:[#allocation0]]
  $region26: #{tpu_custom_call.1} parent=0
    _
  %s5 = ssub.s32 1, %s3
  %s6 = scalar_select 0, %s5, %s3
  $region1: #{tpu_custom_call.1} parent=0
    #allocation2 [shape = 'u8[4096]{0}', space=vmem, size = 0x1000, scoped, tag = 'input window, operand 0, single buffered']
    #allocation3 [shape = 's32[1]{0}', space=sflag, size = 0x4, scoped, tag = 'scoped memory for tpu_custom_call.1']
    #allocation4 [shape = 's32[1]{0}', space=sflag, size = 0x4, scoped, tag = 'scoped memory for tpu_custom_call.1']
    #allocation5 [shape = 'u8[4096]{0}', space=vmem, size = 0x1000, scoped, tag = 'input window, operand 1, single buffered']
    #allocation6 [shape = 's32[1]{0}', space=sflag, size = 0x4, scoped, tag = 'scoped memory for tpu_custom_call.1']
    #allocation7 [shape = 'u8[4096]{0}', space=vmem, size = 0x1000, scoped, tag = 'output window, operand 0, single buffered']
    %7 = vsyncpa [#allocation3], 0
    %8 = vsyncpa [#allocation6], 0
    %9 = vsyncpa [#allocation4], 0
    // Predicated region
    $region2: #{tpu_custom_call.1} parent=1 // pred_check
      _
    $region3: #{tpu_custom_call.1} parent=1 // pred_check_branch
      %11 = sbr.rel (0) target = $region5
    $region4: #{tpu_custom_call.1} parent=1 // pred_region
      %13 = vsyncadd [#allocation3], 0
      %s15 = sshll.u32 %s0, 4
      %s16 = int_to_ptr.hbm [resolvable:$true] %s15
      %s17 = sshll.u32 [#allocation2], 4
      %s18 = int_to_ptr.vmem [resolvable:$true] %s17
      %20 = dma.hbm_to_vmem [thread:$0]  %s16, 128, %s18, [#allocation3]
    $region5: #{tpu_custom_call.1} parent=1 // pred_fallthru
      _
    // Predicated region
    $region6: #{tpu_custom_call.1} parent=1 // pred_check
      _
    $region7: #{tpu_custom_call.1} parent=1 // pred_check_branch
      %22 = sbr.rel (0) target = $region9
    $region8: #{tpu_custom_call.1} parent=1 // pred_region
      %24 = vsyncadd [#allocation6], 0
      %s26 = sshll.u32 %s1, 4
      %s27 = int_to_ptr.hbm [resolvable:$true] %s26
      %s28 = sshll.u32 [#allocation5], 4
      %s29 = int_to_ptr.vmem [resolvable:$true] %s28
      %31 = dma.hbm_to_vmem [thread:$0]  %s27, 128, %s29, [#allocation6]
    $region9: #{tpu_custom_call.1} parent=1 // pred_fallthru
      _
    // Predicated region
    $region10: #{tpu_custom_call.1} parent=1 // pred_check
      _
    $region11: #{tpu_custom_call.1} parent=1 // pred_check_branch
      %33 = sbr.rel (0) target = $region13
    $region12: #{tpu_custom_call.1} parent=1 // pred_region
      %35 = dma.done [#allocation3], 128
    $region13: #{tpu_custom_call.1} parent=1 // pred_fallthru
      _
    // Predicated region
    $region14: #{tpu_custom_call.1} parent=1 // pred_check
      _
    $region15: #{tpu_custom_call.1} parent=1 // pred_check_branch
      %37 = sbr.rel (0) target = $region17
    $region16: #{tpu_custom_call.1} parent=1 // pred_region
      %39 = dma.done [#allocation6], 128
    $region17: #{tpu_custom_call.1} parent=1 // pred_fallthru
      _
    %v40 = vld [vmem:[#allocation2] sm:$0xff]
    %v41 = vld [vmem:[#allocation5] sm:$0xff]
    %v42 = vadd.f32 %v40, %v41
    %vm43 = vcmask 523264
    %44 = vst.msk [vmem:[#allocation7] sm:$0xff] %vm43, %v42
    // Predicated region
    $region18: #{tpu_custom_call.1} parent=1 // pred_check
      _
    $region19: #{tpu_custom_call.1} parent=1 // pred_check_branch
      %46 = sbr.rel (0) target = $region21
    $region20: #{tpu_custom_call.1} parent=1 // pred_region
      %48 = vsyncadd [#allocation4], 0
      %s50 = sshll.u32 [#allocation7], 4
      %s51 = int_to_ptr.vmem [resolvable:$true] %s50
      %s52 = sshll.u32 %s2, 4
      %s53 = int_to_ptr.hbm [resolvable:$true] %s52
      %55 = dma.vmem_to_hbm [thread:$0]  %s51, 128, %s53, [#allocation4]
    $region21: #{tpu_custom_call.1} parent=1 // pred_fallthru
      _
    // Predicated region
    $region22: #{tpu_custom_call.1} parent=1 // pred_check
      _
    $region23: #{tpu_custom_call.1} parent=1 // pred_check_branch
      %57 = sbr.rel (0) target = $region25
    $region24: #{tpu_custom_call.1} parent=1 // pred_region
      %59 = dma.done [#allocation4], 128
    $region25: #{tpu_custom_call.1} parent=1 // pred_fallthru
      _
    %60 = vsyncpa [#allocation3], 1
    %61 = vsyncpa [#allocation6], 1
    %62 = vsyncpa [#allocation4], 1

</llo_original>
